<compile_context>
chip_gen: v6e
topology: v6e:2x2x1
jax: 0.10.0
libtpu: 0.0.40
codegen_flags: <defaults>
</compile_context>

<pallas_src>
import functools
from typing import NamedTuple

import jax
import jax.numpy as jnp
from jax.experimental import pallas as pl
from jax.experimental.pallas import tpu as pltpu


# --------------------------------------------------------------------------
# Small helpers
# --------------------------------------------------------------------------
def _round_up(x, m):
    return ((x + m - 1) // m) * m


def _pick_divisor_tile(dim, target, unit):
    """Largest multiple of `unit` that divides `dim` and is <= `target`.

    `dim` must itself be a multiple of `unit`.
    """
    t = max(unit, (min(target, dim) // unit) * unit)
    while dim % t:
        t -= unit
    return t


_BUDGET_CACHE = None


def _tpu_budgets():
    """(scoped_vmem_limit_bytes, row_tile_cap, k_tile_cap), generation-aware."""
    global _BUDGET_CACHE
    if _BUDGET_CACHE is not None:
        return _BUDGET_CACHE
    vmem_bytes = None
    try:
        info = pltpu.get_tpu_info()
        for attr in ("vmem_capacity_bytes", "vmem_size_bytes", "vmem_bytes"):
            v = getattr(info, attr, None)
            if v:
                vmem_bytes = int(v)
                break
    except Exception:  # query unavailable -> conservative defaults
        vmem_bytes = None
    if vmem_bytes is not None and vmem_bytes >= 128 * 1024 * 1024:
        # v5e / v6e: 128 MiB physical VMEM -> large scoped limit, big tiles.
        budgets = (96 * 1024 * 1024, 2048, 2048)
    else:
        # v7x (64 MiB physical per TC) or unknown: leave compiler headroom.
        budgets = (44 * 1024 * 1024, 1024, 1024)
    _BUDGET_CACHE = budgets
    return budgets


class _Plan(NamedTuple):
    k: int
    o: int
    k_pad: int
    o_pad: int
    tile_k: int
    tile_o: int
    row_cap: int
    vmem_limit: int


def _make_plan(k, o, operand_itemsize, out_itemsize=4):
    vmem_limit, gen_row_cap, k_cap = _tpu_budgets()
    budget = int(vmem_limit * 0.85)           # headroom for compiler scratch

    # ----- reduction (K) tile -----
    if k <= k_cap:
        k_pad, tile_k = k, k                  # full-K block, no K padding
    else:
        k_pad = _round_up(k, 128)
        tile_k = _pick_divisor_tile(k_pad, k_cap, 128)

    # ----- output-feature (O) tile -----
    # Prefer full-O blocks: W's O dim is NOT padded (no 2x weight bytes for
    # small O) and X is streamed from HBM exactly once (single O-tile).
    if 2 * tile_k * o * operand_itemsize <= (budget * 2) // 5:
        o_pad, tile_o = o, o
    else:
        o_pad = _round_up(o, 128)
        o_cap = ((budget * 2) // 5) // (2 * tile_k * operand_itemsize)
        o_cap = max(128, (o_cap // 128) * 128)
        tile_o = _pick_divisor_tile(o_pad, min(o_cap, o_pad), 128)

    # ----- row (N) tile cap from the remaining VMEM budget -----
    fixed = 2 * tile_k * tile_o * operand_itemsize + 2 * o_pad * 4
    per_row = (2 * tile_k * operand_itemsize      # double-buffered x tile
               + 2 * tile_o * out_itemsize        # double-buffered out tile
               + tile_o * 4)                      # f32 accumulator
    fit_rows = max(8, ((budget - fixed) // max(per_row, 1) // 8) * 8)
    row_cap = min(gen_row_cap, fit_rows)

    return _Plan(k, o, k_pad, o_pad, tile_k, tile_o, row_cap, vmem_limit)


def _choose_row_tile(n, cap):
    """Pick (tile_n, n_padded): large tiles, avoid row padding when possible."""
    n8 = _round_up(n, 8)
    cap = max(8, cap)
    if n8 <= cap:
        return n8, n8                          # single row tile, no extra pad
    for cand in (2048, 1024, 512, 256, 128):   # exact divisors -> no padding
        if cand <= cap and n8 % cand == 0:
            return cand, n8
    for cand in (2048, 1024, 512, 256, 128):   # accept modest (<~12.5%) pad
        if cand <= cap:
            pad = _round_up(n8, cand) - n8
            if pad <= max(n8 // 8, 128):
                return cand, _round_up(n8, cand)
    t = max(8, (min(cap, 128) // 8) * 8)
    return t, _round_up(n8, t)


# --------------------------------------------------------------------------
# Kernel
# --------------------------------------------------------------------------
def _linear_kernel(x_ref, w_ref, b_ref, o_ref, acc_ref):
    k_idx = pl.program_id(2)

    @pl.when(k_idx == 0)
    def _init():
        acc_ref[...] = jnp.zeros_like(acc_ref)

    # x tile: (tile_n, tile_k); w tile: (tile_k, tile_o) -- pre-transposed
    # (K, O) layout, so this is a plain MXU matmul with f32 accumulation.
    acc_ref[...] += jnp.dot(x_ref[...], w_ref[...],
                            preferred_element_type=jnp.float32)

    @pl.when(k_idx == pl.num_programs(2) - 1)
    def _finalize():
        # Bias add kept in f32 on the VPU (v5e has no bf16 VPU).
        o_ref[...] = (acc_ref[...] + b_ref[...]).astype(o_ref.dtype)


# --------------------------------------------------------------------------
# Wrappers
# --------------------------------------------------------------------------
def prepare_gallery_linear_params(weight, bias, *, compute_dtype=None):
    """One-time formatting of nn.Linear params for the kernel.

    weight : (O, K) float32 (PyTorch nn.Linear layout)
    bias   : (O,)   float32
    Returns a `packed` tuple; cache it and reuse across calls so the kernel's
    single W read is the only per-call weight HBM traffic.
    """
    o, k = weight.shape
    op_isz = (jnp.dtype(compute_dtype).itemsize if compute_dtype is not None
              else jnp.dtype(weight.dtype).itemsize)
    plan = _make_plan(k, o, op_isz)

    w_t = weight.T                             # (K, O) -- one-time pass
    if (plan.k_pad, plan.o_pad) != (k, o):
        # K zero-padding is required for reduction correctness; O padding only
        # happens when O itself is tiled.
        w_t = jnp.pad(w_t, ((0, plan.k_pad - k), (0, plan.o_pad - o)))
    if compute_dtype is not None:
        w_t = w_t.astype(compute_dtype)

    b2 = bias.astype(jnp.float32)
    if plan.o_pad != o:
        b2 = jnp.pad(b2, (0, plan.o_pad - o))
    b2 = b2.reshape(1, plan.o_pad)

    return w_t, b2, plan


@functools.partial(jax.jit, static_argnames=("plan",))
def _apply_packed(galleries, w_t, b2, plan):
    n = galleries.shape[0]
    k, o = plan.k, plan.o
    out_dtype = galleries.dtype

    x = galleries.reshape(n, -1)
    if x.dtype != w_t.dtype:                   # bf16 (or other) operand path
        x = x.astype(w_t.dtype)

    tile_n, n_pad = _choose_row_tile(n, plan.row_cap)
    if (n_pad, plan.k_pad) != (n, k):
        x = jnp.pad(x, ((0, n_pad - n), (0, plan.k_pad - k)))

    tile_k, tile_o = plan.tile_k, plan.tile_o
    grid = (n_pad // tile_n, plan.o_pad // tile_o, plan.k_pad // tile_k)

    cost = pl.CostEstimate(
        flops=2 * n_pad * plan.k_pad * plan.o_pad,
        transcendentals=0,
        bytes_accessed=(x.size * x.dtype.itemsize
                        + w_t.size * w_t.dtype.itemsize
                        + 4 * (n_pad * plan.o_pad + plan.o_pad)),
    )

    out = pl.pallas_call(
        _linear_kernel,
        out_shape=jax.ShapeDtypeStruct((n_pad, plan.o_pad), out_dtype),
        grid_spec=pltpu.PrefetchScalarGridSpec(
            num_scalar_prefetch=0,
            grid=grid,
            in_specs=[
                pl.BlockSpec((tile_n, tile_k), lambda i, j, kk: (i, kk)),  # x
                pl.BlockSpec((tile_k, tile_o), lambda i, j, kk: (kk, j)),  # W (K,O)
                pl.BlockSpec((1, tile_o), lambda i, j, kk: (0, j)),        # bias
            ],
            out_specs=pl.BlockSpec((tile_n, tile_o), lambda i, j, kk: (i, j)),
            scratch_shapes=[pltpu.VMEM((tile_n, tile_o), jnp.float32)],
        ),
        compiler_params=pltpu.CompilerParams(
            # TODO(synk): on v7x, try pltpu.CORE_PARALLEL on the O axis after
            # confirming megacore sharding in a profile.
            dimension_semantics=("parallel", "parallel", "arbitrary"),
            vmem_limit_bytes=plan.vmem_limit,
        ),
        cost_estimate=cost,
    )(x, w_t, b2)

    return out[:n, :o]


def gallery_linear_combination_packed(galleries, packed):
    """Fast path: `packed` comes from prepare_gallery_linear_params()."""
    w_t, b2, plan = packed
    return _apply_packed(galleries, w_t, b2, plan)


def gallery_linear_combination(galleries, weight, bias, *, compute_dtype=None):
    """Convenience wrapper (prepares W per call).

    For repeated calls, hoist prepare_gallery_linear_params() out of the hot
    loop and call gallery_linear_combination_packed directly.
    """
    packed = prepare_gallery_linear_params(weight, bias,
                                           compute_dtype=compute_dtype)
    return gallery_linear_combination_packed(galleries, packed)


# --------------------------------------------------------------------------
# Demo / self-test
# --------------------------------------------------------------------------
if __name__ == "__main__":
    # Small, module-consistent shapes: N objects, gallery size G, embedding C.
    N, G, C = 8, 4, 32          # input_size = G*C = 128
    OUTPUT_SIZE = 64

    key = jax.random.PRNGKey(0)
    k_x, k_w, k_b = jax.random.split(key, 3)

    galleries = jax.random.normal(k_x, (N, G, C), dtype=jnp.float32)

    # Deterministic parameter init mimicking nn.Linear default:
    # uniform(-1/sqrt(in_features), 1/sqrt(in_features)).
    in_features = G * C
    bound = 1.0 / jnp.sqrt(jnp.float32(in_features))
    weight = jax.random.uniform(
        k_w, (OUTPUT_SIZE, in_features), minval=-bound, maxval=bound,
        dtype=jnp.float32)
    bias = jax.random.uniform(
        k_b, (OUTPUT_SIZE,), minval=-bound, maxval=bound, dtype=jnp.float32)

    # Pure-JAX reference (exact semantics of the PyTorch module).
    y_ref = galleries.reshape(N, -1) @ weight.T + bias

    # --- f32 path (exact parity), packed weights prepared once ---
    packed = prepare_gallery_linear_params(weight, bias)
    y = gallery_linear_combination_packed(galleries, packed)
    y = jax.block_until_ready(y)
    assert y.shape == (N, OUTPUT_SIZE)
    assert jnp.allclose(y, y_ref, atol=1e-4, rtol=1e-4)

    # --- bf16 MXU-operand path (recommended on v6e/v7x), f32 accumulation ---
    y_bf16 = gallery_linear_combination(galleries, weight, bias,
                                        compute_dtype=jnp.bfloat16)
    y_bf16 = jax.block_until_ready(y_bf16)
    assert y_bf16.shape == (N, OUTPUT_SIZE)
    assert jnp.allclose(y_bf16, y_ref, atol=1e-1, rtol=1e-1)

    print("KERNEL_OK")
</pallas_src>

<mosaic_0001>
module attributes {stable_mosaic.version = 11 : i64} {
  func.func @_linear_kernel(%arg0: i32, %arg1: i32, %arg2: i32, %arg3: memref<8x128xf32, #tpu.memory_space<vmem>>, %arg4: memref<128x64xf32, #tpu.memory_space<vmem>>, %arg5: memref<1x64xf32, #tpu.memory_space<vmem>>, %arg6: memref<8x64xf32, #tpu.memory_space<vmem>>, %arg7: memref<8x64xf32, #tpu.memory_space<vmem>>) attributes {dimension_semantics = [#tpu.dimension_semantics<parallel>, #tpu.dimension_semantics<parallel>, #tpu.dimension_semantics<arbitrary>], iteration_bounds = array<i64: 1, 1, 1>, scalar_prefetch = 0 : i64, scratch_operands = 1 : i64, tpu.core_type = #tpu.core_type<tc>, window_params = [{transform_indices = @transform_0, window_bounds = array<i64: 8, 128>}, {transform_indices = @transform_1, window_bounds = array<i64: 128, 64>}, {transform_indices = @transform_2, window_bounds = array<i64: 1, 64>}, {transform_indices = @transform_3, window_bounds = array<i64: 8, 64>}]} {
    %c0_i32 = arith.constant 0 : i32
    %0 = arith.cmpi eq, %arg2, %c0_i32 : i32
    %1 = arith.extui %0 : i1 to i32
    %c0_i32_0 = arith.constant 0 : i32
    %2 = arith.cmpi ne, %1, %c0_i32_0 : i32
    scf.if %2 {
      %cst_10 = arith.constant 0.000000e+00 : f32
      %12 = vector.broadcast %cst_10 : f32 to vector<8x64xf32>
      %c0_11 = arith.constant 0 : index
      %c0_12 = arith.constant 0 : index
      %13 = vector.load %arg7[%c0_11, %c0_12] : memref<8x64xf32, #tpu.memory_space<vmem>>, vector<8x64xf32>
      tpu.vector_store %arg7[%c0_11, %c0_12], %12 {strides = array<i32>} : memref<8x64xf32, #tpu.memory_space<vmem>>, vector<8x64xf32>,
    } else {
    }
    %c0 = arith.constant 0 : index
    %c0_1 = arith.constant 0 : index
    %3 = vector.load %arg7[%c0, %c0_1] : memref<8x64xf32, #tpu.memory_space<vmem>>, vector<8x64xf32>
    %c0_2 = arith.constant 0 : index
    %c0_3 = arith.constant 0 : index
    %4 = vector.load %arg3[%c0_2, %c0_3] : memref<8x128xf32, #tpu.memory_space<vmem>>, vector<8x128xf32>
    %c0_4 = arith.constant 0 : index
    %c0_5 = arith.constant 0 : index
    %5 = vector.load %arg4[%c0_4, %c0_5] : memref<128x64xf32, #tpu.memory_space<vmem>>, vector<128x64xf32>
    %cst = arith.constant dense<0.000000e+00> : vector<8x64xf32>
    %6 = tpu.matmul %4, %5, %cst {dimension_numbers = #tpu.dot_dimension_numbers<[1], [0], [0], [1], [0, 0, 1, 1], [], []>} : vector<8x128xf32>, vector<128x64xf32>, vector<8x64xf32> -> vector<8x64xf32>
    %7 = arith.addf %3, %6 : vector<8x64xf32>
    %c0_6 = arith.constant 0 : index
    %c0_7 = arith.constant 0 : index
    %8 = vector.load %arg7[%c0_6, %c0_7] : memref<8x64xf32, #tpu.memory_space<vmem>>, vector<8x64xf32>
    tpu.vector_store %arg7[%c0_6, %c0_7], %7 {strides = array<i32>} : memref<8x64xf32, #tpu.memory_space<vmem>>, vector<8x64xf32>,
    %c0_i32_8 = arith.constant 0 : i32
    %9 = arith.cmpi eq, %arg2, %c0_i32_8 : i32
    %10 = arith.extui %9 : i1 to i32
    %c0_i32_9 = arith.constant 0 : i32
    %11 = arith.cmpi ne, %10, %c0_i32_9 : i32
    scf.if %11 {
      %c0_10 = arith.constant 0 : index
      %c0_11 = arith.constant 0 : index
      %12 = vector.load %arg7[%c0_10, %c0_11] : memref<8x64xf32, #tpu.memory_space<vmem>>, vector<8x64xf32>
      %c0_12 = arith.constant 0 : index
      %c0_13 = arith.constant 0 : index
      %13 = vector.load %arg5[%c0_12, %c0_13] : memref<1x64xf32, #tpu.memory_space<vmem>>, vector<1x64xf32>
      %14 = vector.broadcast %13 : vector<1x64xf32> to vector<8x64xf32>
      %15 = arith.addf %12, %14 : vector<8x64xf32>
      %c0_14 = arith.constant 0 : index
      %c0_15 = arith.constant 0 : index
      %16 = vector.load %arg6[%c0_14, %c0_15] : memref<8x64xf32, #tpu.memory_space<vmem>>, vector<8x64xf32>
      tpu.vector_store %arg6[%c0_14, %c0_15], %15 {strides = array<i32>} : memref<8x64xf32, #tpu.memory_space<vmem>>, vector<8x64xf32>,
    } else {
    }
    return
  }
  func.func @transform_0(%arg0: i32, %arg1: i32, %arg2: i32) -> (i32, i32) {
    %c0_i32 = arith.constant 0 : i32
    return %arg0, %arg2 : i32, i32
  }
  func.func @transform_1(%arg0: i32, %arg1: i32, %arg2: i32) -> (i32, i32) {
    %c0_i32 = arith.constant 0 : i32
    return %arg2, %arg1 : i32, i32
  }
  func.func @transform_2(%arg0: i32, %arg1: i32, %arg2: i32) -> (i32, i32) {
    %c0_i32 = arith.constant 0 : i32
    %c0_i32_0 = arith.constant 0 : i32
    return %c0_i32, %arg1 : i32, i32
  }
  func.func @transform_3(%arg0: i32, %arg1: i32, %arg2: i32) -> (i32, i32) {
    %c0_i32 = arith.constant 0 : i32
    return %arg0, %arg1 : i32, i32
  }
}

</mosaic_0001>

<llo_original>
// kernel: _apply_packed.1
$region0: #{_apply_packed.1}
  #allocation0 [shape = 'u32[]', space=smem, size = 0x4, offset = 0x4, fixed_abs, tag = 'smem constant byte address 0x4 - core index']
  #allocation1 [shape = 'u32[144,128]{1,0:T(1,128)}', space=vmem, size = 0x12000, scoped, tag = 'internal scratch']
  #allocation2 [shape = 'f32[8,64]{1,0:T(8,128)}', space=vmem, size = 0x1000, scoped, tag = 'scratch operand']
  %s0 = inlined_call_operand.vmem [shape: f32[8,128], index: 0, kind: input, shape index: {}]
  %s1 = inlined_call_operand.vmem [shape: f32[128,64], index: 1, kind: input, shape index: {}]
  %s2 = inlined_call_operand.vmem [shape: f32[1,64], index: 2, kind: input, shape index: {}]
  %s3 = inlined_call_operand.hbm [shape: f32[8,64], index: 3, kind: output, shape index: {}]
  %s4 = sld [smem:[#allocation0]]
  $region30: #{_apply_packed.1} parent=0
    _
  %s6 = ssub.s32 1, %s4
  %s7 = scalar_select 0, %s6, %s4
  $region1: #{_apply_packed.1} parent=0
    #allocation3 [shape = 'u8[4096]{0}', space=vmem, size = 0x1000, scoped, tag = 'output window, operand 0, single buffered']
    #allocation4 [shape = 's32[1]{0}', space=sflag, size = 0x4, scoped, tag = 'scoped memory for _apply_packed.1']
    %8 = vsyncpa [#allocation4], 0
    // Predicated region
    $region2: #{_apply_packed.1} parent=1 // pred_check
      _
    $region3: #{_apply_packed.1} parent=1 // pred_check_branch
      %10 = sbr.rel (0) target = $region5
    $region4: #{_apply_packed.1} parent=1 // pred_region
      _
    $region5: #{_apply_packed.1} parent=1 // pred_fallthru
      _
    // Predicated region
    $region6: #{_apply_packed.1} parent=1 // pred_check
      _
    $region7: #{_apply_packed.1} parent=1 // pred_check_branch
      %12 = sbr.rel (0) target = $region9
    $region8: #{_apply_packed.1} parent=1 // pred_region
      _
    $region9: #{_apply_packed.1} parent=1 // pred_fallthru
      _
    // Predicated region
    $region10: #{_apply_packed.1} parent=1 // pred_check
      _
    $region11: #{_apply_packed.1} parent=1 // pred_check_branch
      %14 = sbr.rel (0) target = $region13
    $region12: #{_apply_packed.1} parent=1 // pred_region
      _
    $region13: #{_apply_packed.1} parent=1 // pred_fallthru
      _
    %p15 = scmp.eq.s32.totalorder 0, 0
    // Predicated region
    $region14: #{_apply_packed.1} parent=1 // pred_check
      %p16 = pneg %p15
    $region15: #{_apply_packed.1} parent=1 // pred_check_branch
      %18 = sbr.rel (%p16) target = $region17
    $region16: #{_apply_packed.1} parent=1 // pred_region
      %vm19 = vcmask 523264
      %20 = vst.msk [vmem:[#allocation2] sm:$0xff] %vm19, 0.0
    $region17: #{_apply_packed.1} parent=1 // pred_fallthru
      _
    %v21 = vld [vmem:[#allocation2] sm:$0xff]
    %v22 = vld [vmem:[%s0] sm:$0xff]
    %v23 = vld [vmem:[%s1] sm:$0xff]
    %v24 = vld [vmem:[%s1 + $0x8] sm:$0xff]
    %v25 = vld [vmem:[%s1 + $0x10] sm:$0xff]
    %v26 = vld [vmem:[%s1 + $0x18] sm:$0xff]
    %v27 = vld [vmem:[%s1 + $0x20] sm:$0xff]
    %v28 = vld [vmem:[%s1 + $0x28] sm:$0xff]
    %v29 = vld [vmem:[%s1 + $0x30] sm:$0xff]
    %v30 = vld [vmem:[%s1 + $0x38] sm:$0xff]
    %v31 = vld [vmem:[%s1 + $0x40] sm:$0xff]
    %v32 = vld [vmem:[%s1 + $0x48] sm:$0xff]
    %v33 = vld [vmem:[%s1 + $0x50] sm:$0xff]
    %v34 = vld [vmem:[%s1 + $0x58] sm:$0xff]
    %v35 = vld [vmem:[%s1 + $0x60] sm:$0xff]
    %v36 = vld [vmem:[%s1 + $0x68] sm:$0xff]
    %v37 = vld [vmem:[%s1 + $0x70] sm:$0xff]
    %v38 = vld [vmem:[%s1 + $0x78] sm:$0xff]
    %39 = vmatprep.subr.mxu0 0.0
    %40 = vmatpush1.msra.mxu0 %v38
    %41 = vmatprep.subr.mxu0 0.0
    %42 = vmatpush1.msra.mxu0 %v37
    %43 = vmatprep.subr.mxu0 0.0
    %44 = vmatpush1.msra.mxu0 %v36
    %45 = vmatprep.subr.mxu0 0.0
    %46 = vmatpush1.msra.mxu0 %v35
    %47 = vmatprep.subr.mxu0 0.0
    %48 = vmatpush1.msra.mxu0 %v34
    %49 = vmatprep.subr.mxu0 0.0
    %50 = vmatpush1.msra.mxu0 %v33
    %51 = vmatprep.subr.mxu0 0.0
    %52 = vmatpush1.msra.mxu0 %v32
    %53 = vmatprep.subr.mxu0 0.0
    %54 = vmatpush1.msra.mxu0 %v31
    %55 = vmatprep.subr.mxu0 0.0
    %56 = vmatpush1.msra.mxu0 %v30
    %57 = vmatprep.subr.mxu0 0.0
    %58 = vmatpush1.msra.mxu0 %v29
    %59 = vmatprep.subr.mxu0 0.0
    %60 = vmatpush1.msra.mxu0 %v28
    %61 = vmatprep.subr.mxu0 0.0
    %62 = vmatpush1.msra.mxu0 %v27
    %63 = vmatprep.subr.mxu0 0.0
    %64 = vmatpush1.msra.mxu0 %v26
    %65 = vmatprep.subr.mxu0 0.0
    %66 = vmatpush1.msra.mxu0 %v25
    %67 = vmatprep.subr.mxu0 0.0
    %68 = vmatpush1.msra.mxu0 %v24
    %69 = vmatprep.subr.mxu0 0.0
    %70 = vmatpush1.msra.mxu0 %v23
    %71 = vmatprep.subr.mxu0 0.0
    %72 = vmatpush2.msra.mxu0 0.0
    %73 = vmatprep.subr.mxu0 0.0
    %74 = vmatpush2.msra.mxu0 0.0
    %75 = vmatprep.subr.mxu0 0.0
    %76 = vmatpush2.msra.mxu0 0.0
    %77 = vmatprep.subr.mxu0 0.0
    %78 = vmatpush2.msra.mxu0 0.0
    %79 = vmatprep.subr.mxu0 0.0
    %80 = vmatpush2.msra.mxu0 0.0
    %81 = vmatprep.subr.mxu0 0.0
    %82 = vmatpush2.msra.mxu0 0.0
    %83 = vmatprep.subr.mxu0 0.0
    %84 = vmatpush2.msra.mxu0 0.0
    %85 = vmatprep.subr.mxu0 0.0
    %86 = vmatpush2.msra.mxu0 0.0
    %87 = vmatprep.subr.mxu0 0.0
    %88 = vmatpush2.msra.mxu0 0.0
    %89 = vmatprep.subr.mxu0 0.0
    %90 = vmatpush2.msra.mxu0 0.0
    %91 = vmatprep.subr.mxu0 0.0
    %92 = vmatpush2.msra.mxu0 0.0
    %93 = vmatprep.subr.mxu0 0.0
    %94 = vmatpush2.msra.mxu0 0.0
    %95 = vmatprep.subr.mxu0 0.0
    %96 = vmatpush2.msra.mxu0 0.0
    %97 = vmatprep.subr.mxu0 0.0
    %98 = vmatpush2.msra.mxu0 0.0
    %99 = vmatprep.subr.mxu0 0.0
    %100 = vmatpush2.msra.mxu0 0.0
    %101 = vmatprep.subr.mxu0 0.0
    %102 = vmatpush2.msra.mxu0 0.0
    %103 = vmatprep.mubr.f32.mxu0 0.0
    %104 = vmatmul.mubr.f32.gmra.mxu0 %v22
    %v105 = vpop.f32.mrf.mxu0
    %v106 = vadd.f32 0.0, %v105
    %v107 = vpop.f32.mrf.mxu0
    %108 = vdwg.mxu0
    %v109 = vadd.f32 %v21, %v106
    %vm110 = vcmask 523264
    %111 = vst.msk [vmem:[#allocation2] sm:$0xff] %vm110, %v109
    // Predicated region
    $region18: #{_apply_packed.1} parent=1 // pred_check
      %p112 = pneg %p15
    $region19: #{_apply_packed.1} parent=1 // pred_check_branch
      %114 = sbr.rel (%p112) target = $region21
    $region20: #{_apply_packed.1} parent=1 // pred_region
      %v115 = vld [vmem:[#allocation2] sm:$0xff]
      %v116 = vld [vmem:[%s2] sm:$0x1]
      %v118 = vlaneseq
      %v119 = vshrl.u32 %v118, 7
      %v120 = vsub.s32 0, %v119
      %v121 = vrot.slane %v116, %v120
      %v123 = vadd.f32 %v115, %v121
      %124 = vst.msk [vmem:[#allocation3] sm:$0xff] %vm110, %v123
    $region21: #{_apply_packed.1} parent=1 // pred_fallthru
      _
    // Predicated region
    $region22: #{_apply_packed.1} parent=1 // pred_check
      _
    $region23: #{_apply_packed.1} parent=1 // pred_check_branch
      %126 = sbr.rel (0) target = $region25
    $region24: #{_apply_packed.1} parent=1 // pred_region
      %s128 = ssub.s32 128, 128
      %129 = vsyncadd [#allocation4], %s128
      %s131 = sshll.u32 [#allocation3], 4
      %s132 = int_to_ptr.vmem [resolvable:$true] %s131
      %134 = dma.vmem_to_hbm [thread:$0]  %s132, 128, %s3, [#allocation4]
    $region25: #{_apply_packed.1} parent=1 // pred_fallthru
      _
    // Predicated region
    $region26: #{_apply_packed.1} parent=1 // pred_check
      _
    $region27: #{_apply_packed.1} parent=1 // pred_check_branch
      %136 = sbr.rel (0) target = $region29
    $region28: #{_apply_packed.1} parent=1 // pred_region
      %137 = dma.done [#allocation4], 128
    $region29: #{_apply_packed.1} parent=1 // pred_fallthru
      _
    %138 = vsyncpa [#allocation4], 1

</llo_original>
